<compile_context>
chip_gen: v7x
topology: tpu7x:2x2x1
jax: 0.10.0
libtpu: 0.0.40
codegen_flags: <defaults>
</compile_context>

<pallas_src>
import jax
import jax.numpy as jnp
from jax.experimental import pallas as pl
from jax.experimental.pallas import tpu as pltpu


# ----------------------------------------------------------------------------
# Deterministic "parameters" from __init__ (unused in forward, kept for parity)
# ----------------------------------------------------------------------------
COLOR_MEAN = jnp.asarray([0.485, 0.456, 0.406], dtype=jnp.float32)
COLOR_STD = jnp.asarray([0.228, 0.224, 0.225], dtype=jnp.float32)

# Per-block (input + output) VMEM budget.  With the default 2-deep pipeline the
# live working set is ~2x this (<= ~26 MiB); vmem_limit_bytes covers it on all
# generations (v5e/v6e: 128 MiB physical, v7x: 64 MiB physical).
_PER_STEP_BUDGET_BYTES = 13 * 1024 * 1024
_VMEM_LIMIT_BYTES = 32 * 1024 * 1024


# ----------------------------------------------------------------------------
# Pallas kernel: elementwise hot path
#   video = video / 255.0 ; video = video * 255 ; video.type(torch.uint8)
# ----------------------------------------------------------------------------
def color_normalize_kernel(x_ref, o_ref):
    # Cast to f32 inside the kernel: no wrapper-side astype pass over HBM
    # (a no-op for f32 inputs, a 3x+ HBM-traffic saving for bf16/int inputs).
    v = x_ref[...].astype(jnp.float32)
    v = v / 255.0                      # normalize to [0, 1]
    v = v * 255.0                      # back to [0, 255]
    o_ref[...] = v.astype(jnp.uint8)   # truncating cast, same as torch .type(uint8)


def _flatten_2d(shape):
    """Pick a 2-D (rows, cols) view of the contiguous video buffer.

    Prefers cols % 128 == 0 (lane-dense, unmasked vst) and rows % 32 == 0
    (packed uint8 sublane tiles).  Any factorization of the flat buffer is a
    free reshape, and full-width blocks over it are contiguous HBM ranges.
    """
    B, T, C, H, W = shape
    rows, cols = B * T * C, H * W
    total = rows * cols
    if cols % 128 == 0 and rows % 32 == 0:
        return rows, cols
    if total % (32 * 128) == 0:
        c = 128
        while (c * 2 <= 16384
               and total % (c * 2) == 0
               and (total // (c * 2)) % 32 == 0):
            c *= 2
        return total // c, c
    # Fall back to the natural view; ragged edge blocks are masked but correct.
    return rows, cols


def _select_tiles(rows, cols, in_itemsize):
    """Largest block that fits the per-step budget, preferring full lane width."""
    per_elem = in_itemsize + 1  # input bytes + 1 byte uint8 output
    max_block_elems = max(1, _PER_STEP_BUDGET_BYTES // per_elem)

    if cols <= max_block_elems:
        ctile = cols                               # full width -> contiguous DMA
        max_rows = max(1, max_block_elems // cols)
        if rows <= max_rows:
            rtile = rows
        elif max_rows >= 32:
            rtile = (max_rows // 32) * 32          # 32-aligned uint8 sublane tiles
        else:
            rtile = max_rows
    else:
        # A single full-width row exceeds the budget (enormous H*W): split the
        # lane axis on a 128 boundary instead.
        rtile = min(rows, 8)
        ctile = min(cols, max(128, ((max_block_elems // rtile) // 128) * 128))
    return rtile, ctile


def color_normalize_forward(video):
    """video: (B, T, C, H, W) array with values in [0, 255].

    Returns a uint8 array of the same shape (deterministic / non-augment path).
    """
    if video.dtype == jnp.float64:  # keep Mosaic to <=32-bit element types
        video = video.astype(jnp.float32)

    shape = video.shape
    rows, cols = _flatten_2d(shape)
    x2d = video.reshape(rows, cols)

    rtile, ctile = _select_tiles(rows, cols, x2d.dtype.itemsize)
    grid = (pl.cdiv(rows, rtile), pl.cdiv(cols, ctile))
    total = rows * cols

    out2d = pl.pallas_call(
        color_normalize_kernel,
        out_shape=jax.ShapeDtypeStruct((rows, cols), jnp.uint8),
        grid=grid,
        in_specs=[pl.BlockSpec((rtile, ctile), lambda i, j: (i, j))],
        out_specs=pl.BlockSpec((rtile, ctile), lambda i, j: (i, j)),
        compiler_params=pltpu.CompilerParams(
            dimension_semantics=("parallel", "parallel"),
            vmem_limit_bytes=_VMEM_LIMIT_BYTES,
        ),
        cost_estimate=pl.CostEstimate(
            flops=2 * total,
            transcendentals=0,  # constant divide: no per-element transcendental
            bytes_accessed=total * (x2d.dtype.itemsize + 1),
        ),
    )(x2d)

    return out2d.reshape(shape)


if __name__ == "__main__":
    key = jax.random.PRNGKey(0)
    B, T, C, H, W = 2, 4, 3, 16, 16
    video = jax.random.uniform(
        key, (B, T, C, H, W), dtype=jnp.float32, minval=0.0, maxval=255.0
    )

    out = color_normalize_forward(video)
    out = jax.block_until_ready(out)

    # reference check against plain-JAX semantics of the non-augment path
    ref = ((video / 255.0) * 255.0).astype(jnp.uint8)
    assert out.shape == (B, T, C, H, W)
    assert out.dtype == jnp.uint8
    assert bool(jnp.all(out == ref))

    print("KERNEL_OK")
</pallas_src>

<mosaic_0001>
module attributes {stable_mosaic.version = 11 : i64} {
  func.func @color_normalize_kernel(%arg0: i32, %arg1: i32, %arg2: memref<24x256xf32, #tpu.memory_space<vmem>>, %arg3: memref<24x256xi8, #tpu.memory_space<vmem>>) attributes {dimension_semantics = [#tpu.dimension_semantics<parallel>, #tpu.dimension_semantics<parallel>], iteration_bounds = array<i64: 1, 1>, scalar_prefetch = 0 : i64, scratch_operands = 0 : i64, tpu.core_type = #tpu.core_type<tc>, window_params = [{transform_indices = @transform_0, window_bounds = array<i64: 24, 256>}, {transform_indices = @transform_1, window_bounds = array<i64: 24, 256>}]} {
    %c0 = arith.constant 0 : index
    %c0_0 = arith.constant 0 : index
    %0 = vector.load %arg2[%c0, %c0_0] : memref<24x256xf32, #tpu.memory_space<vmem>>, vector<24x256xf32>
    %cst = arith.constant 2.550000e+02 : f32
    %1 = vector.broadcast %cst : f32 to vector<24x256xf32>
    %2 = arith.divf %0, %1 : vector<24x256xf32>
    %cst_1 = arith.constant 2.550000e+02 : f32
    %3 = vector.broadcast %cst_1 : f32 to vector<24x256xf32>
    %4 = arith.mulf %2, %3 : vector<24x256xf32>
    %5 = arith.fptoui %4 : vector<24x256xf32> to vector<24x256xi8>
    %c0_2 = arith.constant 0 : index
    %c0_3 = arith.constant 0 : index
    %6 = vector.load %arg3[%c0_2, %c0_3] : memref<24x256xi8, #tpu.memory_space<vmem>>, vector<24x256xi8>
    tpu.vector_store %arg3[%c0_2, %c0_3], %5 {strides = array<i32>} : memref<24x256xi8, #tpu.memory_space<vmem>>, vector<24x256xi8>,
    return
  }
  func.func @transform_0(%arg0: i32, %arg1: i32) -> (i32, i32) {
    %c0_i32 = arith.constant 0 : i32
    return %arg0, %arg1 : i32, i32
  }
  func.func @transform_1(%arg0: i32, %arg1: i32) -> (i32, i32) {
    %c0_i32 = arith.constant 0 : i32
    return %arg0, %arg1 : i32, i32
  }
}

</mosaic_0001>

<llo_original>
// kernel: tpu_custom_call.1
$region0: #{tpu_custom_call.1}
  #allocation0 [shape = 'u32[]', space=smem, size = 0x4, offset = 0x4, fixed_abs, tag = 'smem constant byte address 0x4 - core index']
  #allocation1 [shape = 'u32[144,128]{1,0:T(1,128)}', space=vmem, size = 0x12000, scoped, tag = 'internal scratch']
  %s0 = inlined_call_operand.hbm [shape: f32[24,256], index: 0, kind: input, shape index: {}]
  %s1 = inlined_call_operand.hbm [shape: u8[24,256], index: 1, kind: output, shape index: {}]
  %s2 = sld [smem:[#allocation0]]
  $region18: #{tpu_custom_call.1} parent=0
    _
  %s4 = ssub.s32 1, %s2
  %s5 = scalar_select 0, %s4, %s2
  $region1: #{tpu_custom_call.1} parent=0
    #allocation2 [shape = 'u8[24576]{0}', space=vmem, size = 0x6000, scoped, tag = 'input window, operand 0, single buffered']
    #allocation3 [shape = 's32[1]{0}', space=sflag, size = 0x4, scoped, tag = 'scoped memory for tpu_custom_call.1']
    #allocation4 [shape = 's32[1]{0}', space=sflag, size = 0x4, scoped, tag = 'scoped memory for tpu_custom_call.1']
    #allocation5 [shape = 'u8[6144]{0}', space=vmem, size = 0x1800, scoped, tag = 'output window, operand 0, single buffered']
    %6 = vsyncpa [#allocation3], 0
    %7 = vsyncpa [#allocation4], 0
    // Predicated region
    $region2: #{tpu_custom_call.1} parent=1 // pred_check
      _
    $region3: #{tpu_custom_call.1} parent=1 // pred_check_branch
      %9 = sbr.rel (0) target = $region5
    $region4: #{tpu_custom_call.1} parent=1 // pred_region
      %s11 = ssub.s32 768, 768
      %12 = vsyncadd [#allocation3], %s11
      %s13 = sshll.u32 [#allocation2], 4
      %s14 = int_to_ptr.vmem [resolvable:$true] %s13
      %19 = dma.hbm_to_vmem [thread:$0]  %s0, 768, %s14, [#allocation3], 256, 256, 16
    $region5: #{tpu_custom_call.1} parent=1 // pred_fallthru
      _
    // Predicated region
    $region6: #{tpu_custom_call.1} parent=1 // pred_check
      _
    $region7: #{tpu_custom_call.1} parent=1 // pred_check_branch
      %21 = sbr.rel (0) target = $region9
    $region8: #{tpu_custom_call.1} parent=1 // pred_region
      %22 = dma.done [#allocation3], 768
    $region9: #{tpu_custom_call.1} parent=1 // pred_fallthru
      _
    %v23 = vld [vmem:[#allocation2] sm:$0xff]
    %v24 = vld [vmem:[#allocation2 + $0x8] sm:$0xff]
    %v25 = vld [vmem:[#allocation2 + $0x10] sm:$0xff]
    %v26 = vld [vmem:[#allocation2 + $0x18] sm:$0xff]
    %v27 = vld [vmem:[#allocation2 + $0x20] sm:$0xff]
    %v28 = vld [vmem:[#allocation2 + $0x28] sm:$0xff]
    %v29 = vrcp.pop 255.0
    %v30 = vmul.f32 %v23, %v29
    %v31 = vmul.f32 %v24, %v29
    %v32 = vmul.f32 %v25, %v29
    %v33 = vmul.f32 %v26, %v29
    %v34 = vmul.f32 %v27, %v29
    %v35 = vmul.f32 %v28, %v29
    %v36 = vmul.f32 %v30, 255.0
    %v37 = vmul.f32 %v31, 255.0
    %v38 = vmul.f32 %v32, 255.0
    %v39 = vmul.f32 %v33, 255.0
    %v40 = vmul.f32 %v34, 255.0
    %v41 = vmul.f32 %v35, 255.0
    %v42 = vtrunc.f32 %v36
    %v43 = vtrunc.f32 %v37
    %v44 = vtrunc.f32 %v38
    %v45 = vtrunc.f32 %v39
    %v46 = vtrunc.f32 %v40
    %v47 = vtrunc.f32 %v41
    %v48 = vpack.c.f32.eXmY %v42, %v44, 56
    %v52 = vpack.c.f32.eXmY %v46, %v46, 56
    %v56 = vpack.c.b8 %v52, %v48
    %v58 = vpack.c.f32.eXmY %v43, %v45, 56
    %v62 = vpack.c.f32.eXmY %v47, %v47, 56
    %v66 = vpack.c.b8 %v62, %v58
    %v68 = vunpack.c.0.s8 %v56
    %v69 = vunpack.c.0.s8 %v66
    %v70 = vunpack.c.1.s8 %v56
    %v71 = vunpack.c.1.s8 %v66
    %v72 = vunpack.c.2.s8 %v56
    %v73 = vunpack.c.2.s8 %v66
    %v74 = vpack.c.b16 %v69, %v68
    %v75 = vpack.c.b8 %v74, %v74
    %v76 = vpack.c.b16 %v71, %v70
    %v77 = vpack.c.b8 %v76, %v76
    %v78 = vpack.c.b16 %v73, %v72
    %v79 = vpack.c.b8 %v78, %v78
    %80 = vst [vmem:[#allocation5] sm:$0xf] %v75
    %81 = vst [vmem:[#allocation5 + $0x4] sm:$0xf] %v77
    %82 = vst [vmem:[#allocation5 + $0x8] sm:$0xf] %v79
    // Predicated region
    $region10: #{tpu_custom_call.1} parent=1 // pred_check
      _
    $region11: #{tpu_custom_call.1} parent=1 // pred_check_branch
      %84 = sbr.rel (0) target = $region13
    $region12: #{tpu_custom_call.1} parent=1 // pred_region
      %s86 = ssub.s32 192, 192
      %87 = vsyncadd [#allocation4], %s86
      %s88 = sshll.u32 [#allocation5], 4
      %s89 = int_to_ptr.vmem [resolvable:$true] %s88
      %94 = dma.vmem_to_hbm [thread:$0]  %s89, 192, %s1, [#allocation4], 64, 64, 4
    $region13: #{tpu_custom_call.1} parent=1 // pred_fallthru
      _
    // Predicated region
    $region14: #{tpu_custom_call.1} parent=1 // pred_check
      _
    $region15: #{tpu_custom_call.1} parent=1 // pred_check_branch
      %96 = sbr.rel (0) target = $region17
    $region16: #{tpu_custom_call.1} parent=1 // pred_region
      %97 = dma.done [#allocation4], 192
    $region17: #{tpu_custom_call.1} parent=1 // pred_fallthru
      _
    %98 = vsyncpa [#allocation3], 1
    %99 = vsyncpa [#allocation4], 1

</llo_original>
